<compile_context>
chip_gen: v7x
topology: tpu7x:2x2x1
jax: 0.10.0
libtpu: 0.0.40
codegen_flags: <defaults>
</compile_context>

<pallas_src>
import functools

import jax
import jax.numpy as jnp
from jax import lax
from jax.experimental import pallas as pl
from jax.experimental.pallas import tpu as pltpu

LEAKY_SLOPE = 0.01  # F.leaky_relu default negative_slope
_LANE = 128
_SUBLANE = 8


def _round_up(x, m):
    return ((x + m - 1) // m) * m


def _leaky_relu(x):
    return jnp.where(x > 0, x, LEAKY_SLOPE * x)


# ----------------------------------------------------------------------------- kernel
def _decoder_kernel(num_extra_hidden,
                    s_ref, a_ref, w0s_ref, w0a_ref, b0_ref,
                    wh_ref, bh_ref, wo_ref, bo_ref, o_ref):
    wdt = w0s_ref.dtype  # compute dtype of the MXU operands (f32 or bf16)

    # First hidden layer, concat folded into two matmuls:
    #   leaky_relu(state @ W0[:S] + action @ W0[S:] + b0)
    h = (jnp.dot(s_ref[...].astype(wdt), w0s_ref[...],
                 preferred_element_type=jnp.float32)
         + jnp.dot(a_ref[...].astype(wdt), w0a_ref[...],
                   preferred_element_type=jnp.float32)
         + b0_ref[...].astype(jnp.float32))
    h = _leaky_relu(h)

    def layer(i, h):
        y = jnp.dot(h.astype(wdt), wh_ref[i], preferred_element_type=jnp.float32)
        return _leaky_relu(y + bh_ref[i].astype(jnp.float32))

    if num_extra_hidden <= 8:
        # Shallow nets: static unroll is fine (small code size, full LLO visibility).
        for i in range(num_extra_hidden):
            h = layer(i, h)
    else:
        # Deep nets: bound live ranges / code size with a rolled loop.
        h = lax.fori_loop(0, num_extra_hidden, layer, h, unroll=2)

    # Output layer (no activation), lane-dense store (padded last dim).
    out = (jnp.dot(h.astype(wdt), wo_ref[...], preferred_element_type=jnp.float32)
           + bo_ref[...].astype(jnp.float32))
    o_ref[...] = out.astype(o_ref.dtype)


# ----------------------------------------------------------------------------- wrapper
def init_params(key, state_dim, action_dim, output_dim, hidden_dim, num_layers):
    """Deterministic synthetic init (uniform +-1/sqrt(fan_in), like nn.Linear).

    Weight layout is (in_features, out_features) so y = x @ W + b matches
    PyTorch's nn.Linear (y = x @ W.T + b with W of shape (out, in)).
    """
    ks = jax.random.split(key, 6)
    in_dim = state_dim + action_dim

    def uni(k, shape, fan_in):
        lim = 1.0 / jnp.sqrt(jnp.float32(fan_in))
        return jax.random.uniform(k, shape, jnp.float32, -lim, lim)

    n_hidden = num_layers - 1
    return {
        "w0": uni(ks[0], (in_dim, hidden_dim), in_dim),
        "b0": uni(ks[1], (1, hidden_dim), in_dim),
        "wh": uni(ks[2], (n_hidden, hidden_dim, hidden_dim), hidden_dim),
        "bh": uni(ks[3], (n_hidden, 1, hidden_dim), hidden_dim),
        "wo": uni(ks[4], (hidden_dim, output_dim), hidden_dim),
        "bo": uni(ks[5], (1, output_dim), hidden_dim),
    }


def prepare_params(params, state_dim, compute_dtype=jnp.float32):
    """One-time (outside the hot path): split w0 at the state/action boundary and
    zero-pad feature dims to multiples of 128 so the kernel is lane-dense.
    Zero padding is exact: padded hidden columns stay 0 through leaky_relu and
    contribute nothing downstream; padded output columns are sliced off."""
    w0, b0 = params["w0"], params["b0"]
    wh, bh = params["wh"], params["bh"]
    wo, bo = params["wo"], params["bo"]

    hidden = w0.shape[1]
    out_dim = wo.shape[1]
    hp = _round_up(hidden, _LANE)
    op = _round_up(out_dim, _LANE)
    n_hidden = wh.shape[0]

    def pad2(m, rows, cols):
        return jnp.pad(m, ((0, rows - m.shape[0]), (0, cols - m.shape[1])))

    w0s = pad2(w0[:state_dim], state_dim, hp)
    w0a = pad2(w0[state_dim:], w0.shape[0] - state_dim, hp)
    b0p = pad2(b0.reshape(1, -1), 1, hp)
    if n_hidden == 0:
        whp = jnp.zeros((1, hp, hp), w0.dtype)     # dummy, never read
        bhp = jnp.zeros((1, 1, hp), w0.dtype)
    else:
        whp = jnp.pad(wh, ((0, 0), (0, hp - hidden), (0, hp - hidden)))
        bhp = jnp.pad(bh.reshape(n_hidden, 1, hidden),
                      ((0, 0), (0, 0), (0, hp - hidden)))
    wop = pad2(wo, hp, op)
    bop = pad2(bo.reshape(1, -1), 1, op)

    cast = lambda a: a.astype(compute_dtype)
    return {
        "w0s": cast(w0s), "w0a": cast(w0a), "b0": cast(b0p),
        "wh": cast(whp), "bh": cast(bhp), "wo": cast(wop), "bo": cast(bop),
        "hidden_dim": hidden, "output_dim": out_dim, "n_hidden": n_hidden,
    }


def _pick_block_batch(batch, in_dim, hp, op, weight_bytes,
                      budget_bytes=24 << 20, preferred=512):
    """Largest batch tile (multiple of 8, >=8) that fits a conservative VMEM budget:
    resident weights (x2 for buffering slack) + double-buffered in/out tiles +
    live f32 intermediates. Budget is chosen to be safe on v7x (64 MiB phys)."""
    tb = min(_round_up(preferred, _SUBLANE), _round_up(max(batch, 1), _SUBLANE))
    while tb > _SUBLANE:
        tile_bytes = (2 * tb * in_dim * 4      # state+action tiles, double-buffered
                      + 2 * tb * op * 4        # output tile, double-buffered
                      + 2 * tb * hp * 4)       # live f32 hidden activations
        if 2 * weight_bytes + tile_bytes <= budget_bytes:
            break
        tb = max(_SUBLANE, _round_up(tb // 2, _SUBLANE))
        if tb == _SUBLANE:
            break
    return tb


def decoder_forward(state, action, prepared, num_layers, *, block_batch=None):
    """Fused Decoder forward. `prepared` comes from prepare_params()."""
    batch, s_dim = state.shape
    a_dim = action.shape[1]
    hp = prepared["w0s"].shape[1]
    op = prepared["wo"].shape[1]
    n_hidden = prepared["n_hidden"]
    assert n_hidden == num_layers - 1

    weight_keys = ("w0s", "w0a", "b0", "wh", "bh", "wo", "bo")
    weight_bytes = sum(int(prepared[k].size) * prepared[k].dtype.itemsize
                       for k in weight_keys)

    tb = block_batch or _pick_block_batch(batch, s_dim + a_dim, hp, op, weight_bytes)
    bp = _round_up(batch, tb)
    if bp != batch:
        state = jnp.pad(state, ((0, bp - batch), (0, 0)))
        action = jnp.pad(action, ((0, bp - batch), (0, 0)))

    n_hidden_blk = prepared["wh"].shape[0]  # >= 1 (dummy slot if n_hidden == 0)
    kernel = functools.partial(_decoder_kernel, n_hidden)

    flops = 2 * bp * ((s_dim + a_dim) * hp + n_hidden * hp * hp + hp * op)
    bytes_accessed = (bp * (s_dim + a_dim) * state.dtype.itemsize
                      + weight_bytes + bp * op * 4)

    out_p = pl.pallas_call(
        kernel,
        out_shape=jax.ShapeDtypeStruct((bp, op), jnp.float32),
        grid=(bp // tb,),
        in_specs=[
            # activation tiles: stream over the batch grid (double-buffered DMA)
            pl.BlockSpec((tb, s_dim), lambda i: (i, 0)),
            pl.BlockSpec((tb, a_dim), lambda i: (i, 0)),
            # weights / biases: constant index_map -> resident in VMEM
            pl.BlockSpec((s_dim, hp), lambda i: (0, 0)),
            pl.BlockSpec((a_dim, hp), lambda i: (0, 0)),
            pl.BlockSpec((1, hp), lambda i: (0, 0)),
            pl.BlockSpec((n_hidden_blk, hp, hp), lambda i: (0, 0, 0)),
            pl.BlockSpec((n_hidden_blk, 1, hp), lambda i: (0, 0, 0)),
            pl.BlockSpec((hp, op), lambda i: (0, 0)),
            pl.BlockSpec((1, op), lambda i: (0, 0)),
        ],
        out_specs=pl.BlockSpec((tb, op), lambda i: (i, 0)),
        compiler_params=pltpu.CompilerParams(
            dimension_semantics=("parallel",),      # megacore-shard the batch on v7x
            vmem_limit_bytes=32 * 1024 * 1024,      # explicit, safe on v5e/v6e/v7x
        ),
        cost_estimate=pl.CostEstimate(
            flops=flops, transcendentals=0, bytes_accessed=bytes_accessed),
    )(state, action, prepared["w0s"], prepared["w0a"], prepared["b0"],
      prepared["wh"], prepared["bh"], prepared["wo"], prepared["bo"])

    return out_p[:batch, :prepared["output_dim"]]


def reference_forward(state, action, params, num_layers):
    """Pure-JAX reference mirroring the PyTorch forward (unpadded params)."""
    x = jnp.concatenate((state, action), axis=1)
    x = _leaky_relu(x @ params["w0"] + params["b0"])
    for i in range(num_layers - 1):
        x = _leaky_relu(x @ params["wh"][i] + params["bh"][i])
    return x @ params["wo"] + params["bo"]


if __name__ == "__main__":
    # Small shapes consistent with the module's forward.
    batch = 8
    state_dim = 4
    action_dim = 4
    hidden_dim = 32
    output_dim = 16
    num_layers = 3

    key = jax.random.PRNGKey(0)
    k_state, k_action, k_params = jax.random.split(key, 3)

    state = jax.random.normal(k_state, (batch, state_dim), jnp.float32)
    action = jax.random.normal(k_action, (batch, action_dim), jnp.float32)
    params = init_params(k_params, state_dim, action_dim, output_dim,
                         hidden_dim, num_layers)

    # f32 compute keeps exact parity with the reference; pass jnp.bfloat16 on
    # v6e/v7x for higher MXU throughput (accumulation stays f32 in-kernel).
    prepared = prepare_params(params, state_dim, compute_dtype=jnp.float32)

    out = decoder_forward(state, action, prepared, num_layers)
    out = jax.block_until_ready(out)

    ref = reference_forward(state, action, params, num_layers)
    assert out.shape == (batch, output_dim), out.shape
    assert jnp.allclose(out, ref, atol=1e-5, rtol=1e-5), "mismatch vs reference"

    print("KERNEL_OK")
</pallas_src>

<mosaic_0001>
module attributes {stable_mosaic.version = 11 : i64} {
  func.func @_decoder_kernel(%arg0: i32, %arg1: memref<8x4xf32, #tpu.memory_space<vmem>>, %arg2: memref<8x4xf32, #tpu.memory_space<vmem>>, %arg3: memref<4x128xf32, #tpu.memory_space<vmem>>, %arg4: memref<4x128xf32, #tpu.memory_space<vmem>>, %arg5: memref<1x128xf32, #tpu.memory_space<vmem>>, %arg6: memref<2x128x128xf32, #tpu.memory_space<vmem>>, %arg7: memref<2x1x128xf32, #tpu.memory_space<vmem>>, %arg8: memref<128x128xf32, #tpu.memory_space<vmem>>, %arg9: memref<1x128xf32, #tpu.memory_space<vmem>>, %arg10: memref<8x128xf32, #tpu.memory_space<vmem>>) attributes {dimension_semantics = [#tpu.dimension_semantics<parallel>], iteration_bounds = array<i64: 1>, scalar_prefetch = 0 : i64, scratch_operands = 0 : i64, tpu.core_type = #tpu.core_type<tc>, window_params = [{transform_indices = @transform_0, window_bounds = array<i64: 8, 4>}, {transform_indices = @transform_1, window_bounds = array<i64: 8, 4>}, {pipeline_mode = #tpu.pipeline_mode<synchronous>, transform_indices = @transform_2, window_bounds = array<i64: 4, 128>}, {pipeline_mode = #tpu.pipeline_mode<synchronous>, transform_indices = @transform_3, window_bounds = array<i64: 4, 128>}, {pipeline_mode = #tpu.pipeline_mode<synchronous>, transform_indices = @transform_4, window_bounds = array<i64: 1, 128>}, {pipeline_mode = #tpu.pipeline_mode<synchronous>, transform_indices = @transform_5, window_bounds = array<i64: 2, 128, 128>}, {pipeline_mode = #tpu.pipeline_mode<synchronous>, transform_indices = @transform_6, window_bounds = array<i64: 2, 1, 128>}, {pipeline_mode = #tpu.pipeline_mode<synchronous>, transform_indices = @transform_7, window_bounds = array<i64: 128, 128>}, {pipeline_mode = #tpu.pipeline_mode<synchronous>, transform_indices = @transform_8, window_bounds = array<i64: 1, 128>}, {transform_indices = @transform_9, window_bounds = array<i64: 8, 128>}]} {
    %c0 = arith.constant 0 : index
    %c0_0 = arith.constant 0 : index
    %0 = vector.load %arg1[%c0, %c0_0] : memref<8x4xf32, #tpu.memory_space<vmem>>, vector<8x4xf32>
    %c0_1 = arith.constant 0 : index
    %c0_2 = arith.constant 0 : index
    %1 = vector.load %arg3[%c0_1, %c0_2] : memref<4x128xf32, #tpu.memory_space<vmem>>, vector<4x128xf32>
    %cst = arith.constant dense<0.000000e+00> : vector<8x128xf32>
    %2 = tpu.matmul %0, %1, %cst {dimension_numbers = #tpu.dot_dimension_numbers<[1], [0], [0], [1], [0, 0, 1, 1], [], []>} : vector<8x4xf32>, vector<4x128xf32>, vector<8x128xf32> -> vector<8x128xf32>
    %c0_3 = arith.constant 0 : index
    %c0_4 = arith.constant 0 : index
    %3 = vector.load %arg2[%c0_3, %c0_4] : memref<8x4xf32, #tpu.memory_space<vmem>>, vector<8x4xf32>
    %c0_5 = arith.constant 0 : index
    %c0_6 = arith.constant 0 : index
    %4 = vector.load %arg4[%c0_5, %c0_6] : memref<4x128xf32, #tpu.memory_space<vmem>>, vector<4x128xf32>
    %cst_7 = arith.constant dense<0.000000e+00> : vector<8x128xf32>
    %5 = tpu.matmul %3, %4, %cst_7 {dimension_numbers = #tpu.dot_dimension_numbers<[1], [0], [0], [1], [0, 0, 1, 1], [], []>} : vector<8x4xf32>, vector<4x128xf32>, vector<8x128xf32> -> vector<8x128xf32>
    %6 = arith.addf %2, %5 : vector<8x128xf32>
    %c0_8 = arith.constant 0 : index
    %c0_9 = arith.constant 0 : index
    %7 = vector.load %arg5[%c0_8, %c0_9] : memref<1x128xf32, #tpu.memory_space<vmem>>, vector<1x128xf32>
    %8 = vector.broadcast %7 : vector<1x128xf32> to vector<8x128xf32>
    %9 = arith.addf %6, %8 : vector<8x128xf32>
    %cst_10 = arith.constant 0.000000e+00 : f32
    %10 = vector.broadcast %cst_10 : f32 to vector<8x128xf32>
    %11 = arith.cmpf ogt, %9, %10 : vector<8x128xf32>
    %cst_11 = arith.constant 0.00999999977 : f32
    %12 = vector.broadcast %cst_11 : f32 to vector<8x128xf32>
    %13 = arith.mulf %12, %9 : vector<8x128xf32>
    %14 = arith.select %11, %9, %13 : vector<8x128xi1>, vector<8x128xf32>
    %c0_12 = arith.constant 0 : index
    %c0_13 = arith.constant 0 : index
    %c0_14 = arith.constant 0 : index
    %15 = vector.load %arg6[%c0_12, %c0_13, %c0_14] : memref<2x128x128xf32, #tpu.memory_space<vmem>>, vector<1x128x128xf32>
    %16 = vector.shape_cast %15 : vector<1x128x128xf32> to vector<128x128xf32>
    %cst_15 = arith.constant dense<0.000000e+00> : vector<8x128xf32>
    %17 = tpu.matmul %14, %16, %cst_15 {dimension_numbers = #tpu.dot_dimension_numbers<[1], [0], [0], [1], [0, 0, 1, 1], [], []>} : vector<8x128xf32>, vector<128x128xf32>, vector<8x128xf32> -> vector<8x128xf32>
    %c0_16 = arith.constant 0 : index
    %c0_17 = arith.constant 0 : index
    %c0_18 = arith.constant 0 : index
    %18 = vector.load %arg7[%c0_16, %c0_17, %c0_18] : memref<2x1x128xf32, #tpu.memory_space<vmem>>, vector<1x1x128xf32>
    %19 = vector.shape_cast %18 : vector<1x1x128xf32> to vector<1x128xf32>
    %20 = vector.broadcast %19 : vector<1x128xf32> to vector<8x128xf32>
    %21 = arith.addf %17, %20 : vector<8x128xf32>
    %cst_19 = arith.constant 0.000000e+00 : f32
    %22 = vector.broadcast %cst_19 : f32 to vector<8x128xf32>
    %23 = arith.cmpf ogt, %21, %22 : vector<8x128xf32>
    %cst_20 = arith.constant 0.00999999977 : f32
    %24 = vector.broadcast %cst_20 : f32 to vector<8x128xf32>
    %25 = arith.mulf %24, %21 : vector<8x128xf32>
    %26 = arith.select %23, %21, %25 : vector<8x128xi1>, vector<8x128xf32>
    %c1 = arith.constant 1 : index
    %c0_21 = arith.constant 0 : index
    %c0_22 = arith.constant 0 : index
    %27 = vector.load %arg6[%c1, %c0_21, %c0_22] : memref<2x128x128xf32, #tpu.memory_space<vmem>>, vector<1x128x128xf32>
    %28 = vector.shape_cast %27 : vector<1x128x128xf32> to vector<128x128xf32>
    %cst_23 = arith.constant dense<0.000000e+00> : vector<8x128xf32>
    %29 = tpu.matmul %26, %28, %cst_23 {dimension_numbers = #tpu.dot_dimension_numbers<[1], [0], [0], [1], [0, 0, 1, 1], [], []>} : vector<8x128xf32>, vector<128x128xf32>, vector<8x128xf32> -> vector<8x128xf32>
    %c1_24 = arith.constant 1 : index
    %c0_25 = arith.constant 0 : index
    %c0_26 = arith.constant 0 : index
    %30 = vector.load %arg7[%c1_24, %c0_25, %c0_26] : memref<2x1x128xf32, #tpu.memory_space<vmem>>, vector<1x1x128xf32>
    %31 = vector.shape_cast %30 : vector<1x1x128xf32> to vector<1x128xf32>
    %32 = vector.broadcast %31 : vector<1x128xf32> to vector<8x128xf32>
    %33 = arith.addf %29, %32 : vector<8x128xf32>
    %cst_27 = arith.constant 0.000000e+00 : f32
    %34 = vector.broadcast %cst_27 : f32 to vector<8x128xf32>
    %35 = arith.cmpf ogt, %33, %34 : vector<8x128xf32>
    %cst_28 = arith.constant 0.00999999977 : f32
    %36 = vector.broadcast %cst_28 : f32 to vector<8x128xf32>
    %37 = arith.mulf %36, %33 : vector<8x128xf32>
    %38 = arith.select %35, %33, %37 : vector<8x128xi1>, vector<8x128xf32>
    %c0_29 = arith.constant 0 : index
    %c0_30 = arith.constant 0 : index
    %39 = vector.load %arg8[%c0_29, %c0_30] : memref<128x128xf32, #tpu.memory_space<vmem>>, vector<128x128xf32>
    %cst_31 = arith.constant dense<0.000000e+00> : vector<8x128xf32>
    %40 = tpu.matmul %38, %39, %cst_31 {dimension_numbers = #tpu.dot_dimension_numbers<[1], [0], [0], [1], [0, 0, 1, 1], [], []>} : vector<8x128xf32>, vector<128x128xf32>, vector<8x128xf32> -> vector<8x128xf32>
    %c0_32 = arith.constant 0 : index
    %c0_33 = arith.constant 0 : index
    %41 = vector.load %arg9[%c0_32, %c0_33] : memref<1x128xf32, #tpu.memory_space<vmem>>, vector<1x128xf32>
    %42 = vector.broadcast %41 : vector<1x128xf32> to vector<8x128xf32>
    %43 = arith.addf %40, %42 : vector<8x128xf32>
    %c0_34 = arith.constant 0 : index
    %c0_35 = arith.constant 0 : index
    %44 = vector.load %arg10[%c0_34, %c0_35] : memref<8x128xf32, #tpu.memory_space<vmem>>, vector<8x128xf32>
    tpu.vector_store %arg10[%c0_34, %c0_35], %43 {strides = array<i32>} : memref<8x128xf32, #tpu.memory_space<vmem>>, vector<8x128xf32>,
    return
  }
  func.func @transform_0(%arg0: i32) -> (i32, i32) {
    %c0_i32 = arith.constant 0 : i32
    %c0_i32_0 = arith.constant 0 : i32
    return %arg0, %c0_i32 : i32, i32
  }
  func.func @transform_1(%arg0: i32) -> (i32, i32) {
    %c0_i32 = arith.constant 0 : i32
    %c0_i32_0 = arith.constant 0 : i32
    return %arg0, %c0_i32 : i32, i32
  }
  func.func @transform_2(%arg0: i32) -> (i32, i32) {
    %c0_i32 = arith.constant 0 : i32
    %c0_i32_0 = arith.constant 0 : i32
    %c0_i32_1 = arith.constant 0 : i32
    return %c0_i32, %c0_i32_0 : i32, i32
  }
  func.func @transform_3(%arg0: i32) -> (i32, i32) {
    %c0_i32 = arith.constant 0 : i32
    %c0_i32_0 = arith.constant 0 : i32
    %c0_i32_1 = arith.constant 0 : i32
    return %c0_i32, %c0_i32_0 : i32, i32
  }
  func.func @transform_4(%arg0: i32) -> (i32, i32) {
    %c0_i32 = arith.constant 0 : i32
    %c0_i32_0 = arith.constant 0 : i32
    %c0_i32_1 = arith.constant 0 : i32
    return %c0_i32, %c0_i32_0 : i32, i32
  }
  func.func @transform_5(%arg0: i32) -> (i32, i32, i32) {
    %c0_i32 = arith.constant 0 : i32
    %c0_i32_0 = arith.constant 0 : i32
    %c0_i32_1 = arith.constant 0 : i32
    %c0_i32_2 = arith.constant 0 : i32
    return %c0_i32, %c0_i32_0, %c0_i32_1 : i32, i32, i32
  }
  func.func @transform_6(%arg0: i32) -> (i32, i32, i32) {
    %c0_i32 = arith.constant 0 : i32
    %c0_i32_0 = arith.constant 0 : i32
    %c0_i32_1 = arith.constant 0 : i32
    %c0_i32_2 = arith.constant 0 : i32
    return %c0_i32, %c0_i32_0, %c0_i32_1 : i32, i32, i32
  }
  func.func @transform_7(%arg0: i32) -> (i32, i32) {
    %c0_i32 = arith.constant 0 : i32
    %c0_i32_0 = arith.constant 0 : i32
    %c0_i32_1 = arith.constant 0 : i32
    return %c0_i32, %c0_i32_0 : i32, i32
  }
  func.func @transform_8(%arg0: i32) -> (i32, i32) {
    %c0_i32 = arith.constant 0 : i32
    %c0_i32_0 = arith.constant 0 : i32
    %c0_i32_1 = arith.constant 0 : i32
    return %c0_i32, %c0_i32_0 : i32, i32
  }
  func.func @transform_9(%arg0: i32) -> (i32, i32) {
    %c0_i32 = arith.constant 0 : i32
    %c0_i32_0 = arith.constant 0 : i32
    return %arg0, %c0_i32 : i32, i32
  }
}

</mosaic_0001>

<llo_original>
// kernel: tpu_custom_call.1
$region0: #{tpu_custom_call.1}
  #allocation0 [shape = 'u32[]', space=smem, size = 0x4, offset = 0x4, fixed_abs, tag = 'smem constant byte address 0x4 - core index']
  #allocation1 [shape = 'u32[144,128]{1,0:T(1,128)}', space=vmem, size = 0x12000, scoped, tag = 'internal scratch']
  %s0 = inlined_call_operand.vmem [shape: f32[8,4], index: 0, kind: input, shape index: {}]
  %s1 = inlined_call_operand.vmem [shape: f32[8,4], index: 1, kind: input, shape index: {}]
  %s2 = inlined_call_operand.vmem [shape: f32[4,128], index: 2, kind: input, shape index: {}]
  %s3 = inlined_call_operand.vmem [shape: f32[4,128], index: 3, kind: input, shape index: {}]
  %s4 = inlined_call_operand.vmem [shape: f32[1,128], index: 4, kind: input, shape index: {}]
  %s5 = inlined_call_operand.hbm [shape: f32[2,128,128], index: 5, kind: input, shape index: {}]
  %s6 = inlined_call_operand.vmem [shape: f32[2,1,128], index: 6, kind: input, shape index: {}]
  %s7 = inlined_call_operand.hbm [shape: f32[128,128], index: 7, kind: input, shape index: {}]
  %s8 = inlined_call_operand.vmem [shape: f32[1,128], index: 8, kind: input, shape index: {}]
  %s9 = inlined_call_operand.hbm [shape: f32[8,128], index: 9, kind: output, shape index: {}]
  %s10 = sld [smem:[#allocation0]]
  $region54: #{tpu_custom_call.1} parent=0
    _
  %s12 = ssub.s32 1, %s10
  %s13 = scalar_select 0, %s12, %s10
  $region1: #{tpu_custom_call.1} parent=0
    #allocation2 [shape = 'u8[131072]{0}', space=vmem, size = 0x20000, scoped, tag = 'input window, operand 5, single buffered']
    #allocation3 [shape = 's32[1]{0}', space=sflag, size = 0x4, scoped, tag = 'scoped memory for tpu_custom_call.1']
    #allocation4 [shape = 's32[1]{0}', space=sflag, size = 0x4, scoped, tag = 'scoped memory for tpu_custom_call.1']
    #allocation5 [shape = 'u8[65536]{0}', space=vmem, size = 0x10000, scoped, tag = 'input window, operand 7, single buffered']
    #allocation6 [shape = 's32[1]{0}', space=sflag, size = 0x4, scoped, tag = 'scoped memory for tpu_custom_call.1']
    #allocation7 [shape = 'u8[4096]{0}', space=vmem, size = 0x1000, scoped, tag = 'output window, operand 0, single buffered']
    %14 = vsyncpa [#allocation3], 0
    %15 = vsyncpa [#allocation6], 0
    %16 = vsyncpa [#allocation4], 0
    // Predicated region
    $region2: #{tpu_custom_call.1} parent=1 // pred_check
      _
    $region3: #{tpu_custom_call.1} parent=1 // pred_check_branch
      %18 = sbr.rel (0) target = $region5
    $region4: #{tpu_custom_call.1} parent=1 // pred_region
      _
    $region5: #{tpu_custom_call.1} parent=1 // pred_fallthru
      _
    // Predicated region
    $region6: #{tpu_custom_call.1} parent=1 // pred_check
      _
    $region7: #{tpu_custom_call.1} parent=1 // pred_check_branch
      %20 = sbr.rel (0) target = $region9
    $region8: #{tpu_custom_call.1} parent=1 // pred_region
      _
    $region9: #{tpu_custom_call.1} parent=1 // pred_fallthru
      _
    // Predicated region
    $region10: #{tpu_custom_call.1} parent=1 // pred_check
      _
    $region11: #{tpu_custom_call.1} parent=1 // pred_check_branch
      %22 = sbr.rel (0) target = $region13
    $region12: #{tpu_custom_call.1} parent=1 // pred_region
      _
    $region13: #{tpu_custom_call.1} parent=1 // pred_fallthru
      _
    // Predicated region
    $region14: #{tpu_custom_call.1} parent=1 // pred_check
      _
    $region15: #{tpu_custom_call.1} parent=1 // pred_check_branch
      %24 = sbr.rel (0) target = $region17
    $region16: #{tpu_custom_call.1} parent=1 // pred_region
      _
    $region17: #{tpu_custom_call.1} parent=1 // pred_fallthru
      _
    // Predicated region
    $region18: #{tpu_custom_call.1} parent=1 // pred_check
      _
    $region19: #{tpu_custom_call.1} parent=1 // pred_check_branch
      %26 = sbr.rel (0) target = $region21
    $region20: #{tpu_custom_call.1} parent=1 // pred_region
      _
    $region21: #{tpu_custom_call.1} parent=1 // pred_fallthru
      _
    // Predicated region
    $region22: #{tpu_custom_call.1} parent=1 // pred_check
      _
    $region23: #{tpu_custom_call.1} parent=1 // pred_check_branch
      %28 = sbr.rel (0) target = $region25
    $region24: #{tpu_custom_call.1} parent=1 // pred_region
      %s30 = ssub.s32 4096, 4096
      %31 = vsyncadd [#allocation3], %s30
      %s32 = sshll.u32 [#allocation2], 4
      %s33 = int_to_ptr.vmem [resolvable:$true] %s32
      %38 = dma.hbm_to_vmem [thread:$0]  %s5, 4096, %s33, [#allocation3], 128, 128, 8
    $region25: #{tpu_custom_call.1} parent=1 // pred_fallthru
      _
    // Predicated region
    $region26: #{tpu_custom_call.1} parent=1 // pred_check
      _
    $region27: #{tpu_custom_call.1} parent=1 // pred_check_branch
      %40 = sbr.rel (0) target = $region29
    $region28: #{tpu_custom_call.1} parent=1 // pred_region
      _
    $region29: #{tpu_custom_call.1} parent=1 // pred_fallthru
      _
    // Predicated region
    $region30: #{tpu_custom_call.1} parent=1 // pred_check
      _
    $region31: #{tpu_custom_call.1} parent=1 // pred_check_branch
      %42 = sbr.rel (0) target = $region33
    $region32: #{tpu_custom_call.1} parent=1 // pred_region
      %s44 = ssub.s32 2048, 2048
      %45 = vsyncadd [#allocation6], %s44
      %s46 = sshll.u32 [#allocation5], 4
      %s47 = int_to_ptr.vmem [resolvable:$true] %s46
      %52 = dma.hbm_to_vmem [thread:$0]  %s7, 2048, %s47, [#allocation6], 128, 128, 8
    $region33: #{tpu_custom_call.1} parent=1 // pred_fallthru
      _
    // Predicated region
    $region34: #{tpu_custom_call.1} parent=1 // pred_check
      _
    $region35: #{tpu_custom_call.1} parent=1 // pred_check_branch
      %54 = sbr.rel (0) target = $region37
    $region36: #{tpu_custom_call.1} parent=1 // pred_region
      _
    $region37: #{tpu_custom_call.1} parent=1 // pred_fallthru
      _
    // Predicated region
    $region38: #{tpu_custom_call.1} parent=1 // pred_check
      _
    $region39: #{tpu_custom_call.1} parent=1 // pred_check_branch
      %56 = sbr.rel (0) target = $region41
    $region40: #{tpu_custom_call.1} parent=1 // pred_region
      %57 = dma.done [#allocation3], 4096
    $region41: #{tpu_custom_call.1} parent=1 // pred_fallthru
      _
    // Predicated region
    $region42: #{tpu_custom_call.1} parent=1 // pred_check
      _
    $region43: #{tpu_custom_call.1} parent=1 // pred_check_branch
      %59 = sbr.rel (0) target = $region45
    $region44: #{tpu_custom_call.1} parent=1 // pred_region
      %60 = dma.done [#allocation6], 2048
    $region45: #{tpu_custom_call.1} parent=1 // pred_fallthru
      _
    %v61 = vld [vmem:[%s0] sm:$0xff]
    %v62 = vld [vmem:[%s2] sm:$0xf]
    %v63 = vld [vmem:[%s1] sm:$0xff]
    %v64 = vld [vmem:[%s3] sm:$0xf]
    %vm65 = vcmask 31744
    %v67 = vsel %vm65, %v63, 0
    %vm69 = vcmask 1043456
    %v71 = vsel %vm69, %v64, 0
    %73 = vmatprep.subr.mxu0 0.0
    %74 = vmatpush1.msra.mxu0 %v71
    %75 = vmatprep.subr.mxu0 0.0
    %76 = vmatpush1.msra.mxu0 0.0
    %77 = vmatprep.subr.mxu0 0.0
    %78 = vmatpush1.msra.mxu0 0.0
    %79 = vmatprep.subr.mxu0 0.0
    %80 = vmatpush1.msra.mxu0 0.0
    %81 = vmatprep.subr.mxu0 0.0
    %82 = vmatpush1.msra.mxu0 0.0
    %83 = vmatprep.subr.mxu0 0.0
    %84 = vmatpush1.msra.mxu0 0.0
    %85 = vmatprep.subr.mxu0 0.0
    %86 = vmatpush1.msra.mxu0 0.0
    %87 = vmatprep.subr.mxu0 0.0
    %88 = vmatpush1.msra.mxu0 0.0
    %89 = vmatprep.subr.mxu0 0.0
    %90 = vmatpush1.msra.mxu0 0.0
    %91 = vmatprep.subr.mxu0 0.0
    %92 = vmatpush1.msra.mxu0 0.0
    %93 = vmatprep.subr.mxu0 0.0
    %94 = vmatpush1.msra.mxu0 0.0
    %95 = vmatprep.subr.mxu0 0.0
    %96 = vmatpush1.msra.mxu0 0.0
    %97 = vmatprep.subr.mxu0 0.0
    %98 = vmatpush1.msra.mxu0 0.0
    %99 = vmatprep.subr.mxu0 0.0
    %100 = vmatpush1.msra.mxu0 0.0
    %101 = vmatprep.subr.mxu0 0.0
    %102 = vmatpush1.msra.mxu0 0.0
    %103 = vmatprep.subr.mxu0 0.0
    %104 = vmatpush1.msra.mxu0 0.0
    %105 = vmatprep.subr.mxu0 0.0
    %106 = vmatpush1.msra.mxu0 0.0
    %107 = vmatprep.subr.mxu0 0.0
    %108 = vmatpush1.msra.mxu0 0.0
    %109 = vmatprep.subr.mxu0 0.0
    %110 = vmatpush1.msra.mxu0 0.0
    %111 = vmatprep.subr.mxu0 0.0
    %112 = vmatpush1.msra.mxu0 0.0
    %113 = vmatprep.subr.mxu0 0.0
    %114 = vmatpush1.msra.mxu0 0.0
    %115 = vmatprep.subr.mxu0 0.0
    %116 = vmatpush1.msra.mxu0 0.0
    %117 = vmatprep.subr.mxu0 0.0
    %118 = vmatpush1.msra.mxu0 0.0
    %119 = vmatprep.subr.mxu0 0.0
    %120 = vmatpush1.msra.mxu0 0.0
    %121 = vmatprep.subr.mxu0 0.0
    %122 = vmatpush1.msra.mxu0 0.0
    %123 = vmatprep.subr.mxu0 0.0
    %124 = vmatpush1.msra.mxu0 0.0
    %125 = vmatprep.subr.mxu0 0.0
    %126 = vmatpush1.msra.mxu0 0.0
    %127 = vmatprep.subr.mxu0 0.0
    %128 = vmatpush1.msra.mxu0 0.0
    %129 = vmatprep.subr.mxu0 0.0
    %130 = vmatpush1.msra.mxu0 0.0
    %131 = vmatprep.subr.mxu0 0.0
    %132 = vmatpush1.msra.mxu0 0.0
    %133 = vmatprep.subr.mxu0 0.0
    %134 = vmatpush1.msra.mxu0 0.0
    %135 = vmatprep.subr.mxu0 0.0
    %136 = vmatpush1.msra.mxu0 0.0
    %137 = vmatprep.mubr.f32.mxu0 0.0
    %138 = vmatmul.mubr.f32.gmra.mrb[0].mxu0 %v67
    %v139 = vpop.f32.mrb[0].mxu0
    %v140 = vadd.f32 0.0, %v139
    %v141 = vpop.f32.mrb[0].mxu0
    %142 = vdwg.mxu0
    %v144 = vsel %vm65, %v61, 0
    %v147 = vsel %vm69, %v62, 0
    %149 = vmatprep.subr.mxu0 0.0
    %150 = vmatpush1.msra.mxu0 %v147
    %151 = vmatprep.subr.mxu0 0.0
    %152 = vmatpush1.msra.mxu0 0.0
    %153 = vmatprep.subr.mxu0 0.0
    %154 = vmatpush1.msra.mxu0 0.0
    %155 = vmatprep.subr.mxu0 0.0
    %156 = vmatpush1.msra.mxu0 0.0
    %157 = vmatprep.subr.mxu0 0.0
    %158 = vmatpush1.msra.mxu0 0.0
    %159 = vmatprep.subr.mxu0 0.0
    %160 = vmatpush1.msra.mxu0 0.0
    %161 = vmatprep.subr.mxu0 0.0
    %162 = vmatpush1.msra.mxu0 0.0
    %163 = vmatprep.subr.mxu0 0.0
    %164 = vmatpush1.msra.mxu0 0.0
    %165 = vmatprep.subr.mxu0 0.0
    %166 = vmatpush1.msra.mxu0 0.0
    %167 = vmatprep.subr.mxu0 0.0
    %168 = vmatpush1.msra.mxu0 0.0
    %169 = vmatprep.subr.mxu0 0.0
    %170 = vmatpush1.msra.mxu0 0.0
    %171 = vmatprep.subr.mxu0 0.0
    %172 = vmatpush1.msra.mxu0 0.0
    %173 = vmatprep.subr.mxu0 0.0
    %174 = vmatpush1.msra.mxu0 0.0
    %175 = vmatprep.subr.mxu0 0.0
    %176 = vmatpush1.msra.mxu0 0.0
    %177 = vmatprep.subr.mxu0 0.0
    %178 = vmatpush1.msra.mxu0 0.0
    %179 = vmatprep.subr.mxu0 0.0
    %180 = vmatpush1.msra.mxu0 0.0
    %181 = vmatprep.subr.mxu0 0.0
    %182 = vmatpush1.msra.mxu0 0.0
    %183 = vmatprep.subr.mxu0 0.0
    %184 = vmatpush1.msra.mxu0 0.0
    %185 = vmatprep.subr.mxu0 0.0
    %186 = vmatpush1.msra.mxu0 0.0
    %187 = vmatprep.subr.mxu0 0.0
    %188 = vmatpush1.msra.mxu0 0.0
    %189 = vmatprep.subr.mxu0 0.0
    %190 = vmatpush1.msra.mxu0 0.0
    %191 = vmatprep.subr.mxu0 0.0
    %192 = vmatpush1.msra.mxu0 0.0
    %193 = vmatprep.subr.mxu0 0.0
    %194 = vmatpush1.msra.mxu0 0.0
    %195 = vmatprep.subr.mxu0 0.0
    %196 = vmatpush1.msra.mxu0 0.0
    %197 = vmatprep.subr.mxu0 0.0
    %198 = vmatpush1.msra.mxu0 0.0
    %199 = vmatprep.subr.mxu0 0.0
    %200 = vmatpush1.msra.mxu0 0.0
    %201 = vmatprep.subr.mxu0 0.0
    %202 = vmatpush1.msra.mxu0 0.0
    %203 = vmatprep.subr.mxu0 0.0
    %204 = vmatpush1.msra.mxu0 0.0
    %205 = vmatprep.subr.mxu0 0.0
    %206 = vmatpush1.msra.mxu0 0.0
    %207 = vmatprep.subr.mxu0 0.0
    %208 = vmatpush1.msra.mxu0 0.0
    %209 = vmatprep.subr.mxu0 0.0
    %210 = vmatpush1.msra.mxu0 0.0
    %211 = vmatprep.subr.mxu0 0.0
    %212 = vmatpush1.msra.mxu0 0.0
    %213 = vmatprep.mubr.f32.mxu0 0.0
    %214 = vmatmul.mubr.f32.gmra.mrb[0].mxu0 %v144
    %v215 = vpop.f32.mrb[0].mxu0
    %v216 = vadd.f32 %v140, %v215
    %v217 = vpop.f32.mrb[0].mxu0
    %218 = vdwg.mxu0
    %v219 = vld [vmem:[%s4] sm:$0x1]
    %v221 = vlaneseq
    %v222 = vshrl.u32 %v221, 7
    %v223 = vsub.s32 0, %v222
    %v224 = vrot.slane %v219, %v223
    %v226 = vadd.f32 %v216, %v224
    %vm227 = vcmp.gt.f32.partialorder %v226, 0.0
    %v228 = vmul.f32 %v226, 0.01
    %v229 = vsel %vm227, %v226, %v228
    %v230 = vld [vmem:[#allocation2] sm:$0xff]
    %v231 = vld [vmem:[#allocation2 + $0x8] sm:$0xff]
    %v232 = vld [vmem:[#allocation2 + $0x10] sm:$0xff]
    %v233 = vld [vmem:[#allocation2 + $0x18] sm:$0xff]
    %v234 = vld [vmem:[#allocation2 + $0x20] sm:$0xff]
    %v235 = vld [vmem:[#allocation2 + $0x28] sm:$0xff]
    %v236 = vld [vmem:[#allocation2 + $0x30] sm:$0xff]
    %v237 = vld [vmem:[#allocation2 + $0x38] sm:$0xff]
    %v238 = vld [vmem:[#allocation2 + $0x40] sm:$0xff]
    %v239 = vld [vmem:[#allocation2 + $0x48] sm:$0xff]
    %v240 = vld [vmem:[#allocation2 + $0x50] sm:$0xff]
    %v241 = vld [vmem:[#allocation2 + $0x58] sm:$0xff]
    %v242 = vld [vmem:[#allocation2 + $0x60] sm:$0xff]
    %v243 = vld [vmem:[#allocation2 + $0x68] sm:$0xff]
    %v244 = vld [vmem:[#allocation2 + $0x70] sm:$0xff]
    %v245 = vld [vmem:[#allocation2 + $0x78] sm:$0xff]
    %v246 = vld [vmem:[%s6] sm:$0x1]
    %v248 = vlaneseq
    %v249 = vshrl.u32 %v248, 7
    %v250 = vsub.s32 0, %v249
    %v251 = vrot.slane %v246, %v250
    %253 = vmatprep.subr.mxu0 0.0
    %254 = vmatpush1.msra.mxu0 %v230
    %255 = vmatprep.subr.mxu0 0.0
    %256 = vmatpush1.msra.mxu0 %v231
    %257 = vmatprep.subr.mxu0 0.0
    %258 = vmatpush1.msra.mxu0 %v232
    %259 = vmatprep.subr.mxu0 0.0
    %260 = vmatpush1.msra.mxu0 %v233
    %261 = vmatprep.subr.mxu0 0.0
    %262 = vmatpush1.msra.mxu0 %v234
    %263 = vmatprep.subr.mxu0 0.0
    %264 = vmatpush1.msra.mxu0 %v235
    %265 = vmatprep.subr.mxu0 0.0
    %266 = vmatpush1.msra.mxu0 %v236
    %267 = vmatprep.subr.mxu0 0.0
    %268 = vmatpush1.msra.mxu0 %v237
    %269 = vmatprep.subr.mxu0 0.0
    %270 = vmatpush1.msra.mxu0 %v238
    %271 = vmatprep.subr.mxu0 0.0
    %272 = vmatpush1.msra.mxu0 %v239
    %273 = vmatprep.subr.mxu0 0.0
    %274 = vmatpush1.msra.mxu0 %v240
    %275 = vmatprep.subr.mxu0 0.0
    %276 = vmatpush1.msra.mxu0 %v241
    %277 = vmatprep.subr.mxu0 0.0
    %278 = vmatpush1.msra.mxu0 %v242
    %279 = vmatprep.subr.mxu0 0.0
    %280 = vmatpush1.msra.mxu0 %v243
    %281 = vmatprep.subr.mxu0 0.0
    %282 = vmatpush1.msra.mxu0 %v244
    %283 = vmatprep.subr.mxu0 0.0
    %284 = vmatpush1.msra.mxu0 %v245
    %285 = vmatprep.subr.mxu0 0.0
    %286 = vmatpush1.msra.mxu0 0.0
    %287 = vmatprep.subr.mxu0 0.0
    %288 = vmatpush1.msra.mxu0 0.0
    %289 = vmatprep.subr.mxu0 0.0
    %290 = vmatpush1.msra.mxu0 0.0
    %291 = vmatprep.subr.mxu0 0.0
    %292 = vmatpush1.msra.mxu0 0.0
    %293 = vmatprep.subr.mxu0 0.0
    %294 = vmatpush1.msra.mxu0 0.0
    %295 = vmatprep.subr.mxu0 0.0
    %296 = vmatpush1.msra.mxu0 0.0
    %297 = vmatprep.subr.mxu0 0.0
    %298 = vmatpush1.msra.mxu0 0.0
    %299 = vmatprep.subr.mxu0 0.0
    %300 = vmatpush1.msra.mxu0 0.0
    %301 = vmatprep.subr.mxu0 0.0
    %302 = vmatpush1.msra.mxu0 0.0
    %303 = vmatprep.subr.mxu0 0.0
    %304 = vmatpush1.msra.mxu0 0.0
    %305 = vmatprep.subr.mxu0 0.0
    %306 = vmatpush1.msra.mxu0 0.0
    %307 = vmatprep.subr.mxu0 0.0
    %308 = vmatpush1.msra.mxu0 0.0
    %309 = vmatprep.subr.mxu0 0.0
    %310 = vmatpush1.msra.mxu0 0.0
    %311 = vmatprep.subr.mxu0 0.0
    %312 = vmatpush1.msra.mxu0 0.0
    %313 = vmatprep.subr.mxu0 0.0
    %314 = vmatpush1.msra.mxu0 0.0
    %315 = vmatprep.subr.mxu0 0.0
    %316 = vmatpush1.msra.mxu0 0.0
    %317 = vmatprep.mubr.f32.mxu0 0.0
    %318 = vmatmul.mubr.f32.gmra.mrb[0].mxu0 %v229
    %v319 = vpop.f32.mrb[0].mxu0
    %v320 = vadd.f32 %v251, %v319
    %v321 = vpop.f32.mrb[0].mxu0
    %322 = vdwg.mxu0
    %vm323 = vcmp.gt.f32.partialorder %v320, 0.0
    %v324 = vmul.f32 %v320, 0.01
    %v325 = vsel %vm323, %v320, %v324
    %s326 = scalar_lea.vmem [#allocation2], 128
    %v327 = vld [vmem:[%s326] sm:$0xff]
    %v328 = vld [vmem:[%s326 + $0x8] sm:$0xff]
    %v329 = vld [vmem:[%s326 + $0x10] sm:$0xff]
    %v330 = vld [vmem:[%s326 + $0x18] sm:$0xff]
    %v331 = vld [vmem:[%s326 + $0x20] sm:$0xff]
    %v332 = vld [vmem:[%s326 + $0x28] sm:$0xff]
    %v333 = vld [vmem:[%s326 + $0x30] sm:$0xff]
    %v334 = vld [vmem:[%s326 + $0x38] sm:$0xff]
    %v335 = vld [vmem:[%s326 + $0x40] sm:$0xff]
    %v336 = vld [vmem:[%s326 + $0x48] sm:$0xff]
    %v337 = vld [vmem:[%s326 + $0x50] sm:$0xff]
    %v338 = vld [vmem:[%s326 + $0x58] sm:$0xff]
    %v339 = vld [vmem:[%s326 + $0x60] sm:$0xff]
    %v340 = vld [vmem:[%s326 + $0x68] sm:$0xff]
    %v341 = vld [vmem:[%s326 + $0x70] sm:$0xff]
    %v342 = vld [vmem:[%s326 + $0x78] sm:$0xff]
    %s343 = scalar_lea.vmem %s6, 1
    %v344 = vld [vmem:[%s343] sm:$0x1]
    %v346 = vlaneseq
    %v347 = vshrl.u32 %v346, 7
    %v348 = vsub.s32 0, %v347
    %v349 = vrot.slane %v344, %v348
    %351 = vmatprep.subr.mxu0 0.0
    %352 = vmatpush1.msra.mxu0 %v327
    %353 = vmatprep.subr.mxu0 0.0
    %354 = vmatpush1.msra.mxu0 %v328
    %355 = vmatprep.subr.mxu0 0.0
    %356 = vmatpush1.msra.mxu0 %v329
    %357 = vmatprep.subr.mxu0 0.0
    %358 = vmatpush1.msra.mxu0 %v330
    %359 = vmatprep.subr.mxu0 0.0
    %360 = vmatpush1.msra.mxu0 %v331
    %361 = vmatprep.subr.mxu0 0.0
    %362 = vmatpush1.msra.mxu0 %v332
    %363 = vmatprep.subr.mxu0 0.0
    %364 = vmatpush1.msra.mxu0 %v333
    %365 = vmatprep.subr.mxu0 0.0
    %366 = vmatpush1.msra.mxu0 %v334
    %367 = vmatprep.subr.mxu0 0.0
    %368 = vmatpush1.msra.mxu0 %v335
    %369 = vmatprep.subr.mxu0 0.0
    %370 = vmatpush1.msra.mxu0 %v336
    %371 = vmatprep.subr.mxu0 0.0
    %372 = vmatpush1.msra.mxu0 %v337
    %373 = vmatprep.subr.mxu0 0.0
    %374 = vmatpush1.msra.mxu0 %v338
    %375 = vmatprep.subr.mxu0 0.0
    %376 = vmatpush1.msra.mxu0 %v339
    %377 = vmatprep.subr.mxu0 0.0
    %378 = vmatpush1.msra.mxu0 %v340
    %379 = vmatprep.subr.mxu0 0.0
    %380 = vmatpush1.msra.mxu0 %v341
    %381 = vmatprep.subr.mxu0 0.0
    %382 = vmatpush1.msra.mxu0 %v342
    %383 = vmatprep.subr.mxu0 0.0
    %384 = vmatpush1.msra.mxu0 0.0
    %385 = vmatprep.subr.mxu0 0.0
    %386 = vmatpush1.msra.mxu0 0.0
    %387 = vmatprep.subr.mxu0 0.0
    %388 = vmatpush1.msra.mxu0 0.0
    %389 = vmatprep.subr.mxu0 0.0
    %390 = vmatpush1.msra.mxu0 0.0
    %391 = vmatprep.subr.mxu0 0.0
    %392 = vmatpush1.msra.mxu0 0.0
    %393 = vmatprep.subr.mxu0 0.0
    %394 = vmatpush1.msra.mxu0 0.0
    %395 = vmatprep.subr.mxu0 0.0
    %396 = vmatpush1.msra.mxu0 0.0
    %397 = vmatprep.subr.mxu0 0.0
    %398 = vmatpush1.msra.mxu0 0.0
    %399 = vmatprep.subr.mxu0 0.0
    %400 = vmatpush1.msra.mxu0 0.0
    %401 = vmatprep.subr.mxu0 0.0
    %402 = vmatpush1.msra.mxu0 0.0
    %403 = vmatprep.subr.mxu0 0.0
    %404 = vmatpush1.msra.mxu0 0.0
    %405 = vmatprep.subr.mxu0 0.0
    %406 = vmatpush1.msra.mxu0 0.0
    %407 = vmatprep.subr.mxu0 0.0
    %408 = vmatpush1.msra.mxu0 0.0
    %409 = vmatprep.subr.mxu0 0.0
    %410 = vmatpush1.msra.mxu0 0.0
    %411 = vmatprep.subr.mxu0 0.0
    %412 = vmatpush1.msra.mxu0 0.0
    %413 = vmatprep.subr.mxu0 0.0
    %414 = vmatpush1.msra.mxu0 0.0
    %415 = vmatprep.mubr.f32.mxu0 0.0
    %416 = vmatmul.mubr.f32.gmra.mrb[0].mxu0 %v325
    %v417 = vpop.f32.mrb[0].mxu0
    %v418 = vadd.f32 %v349, %v417
    %v419 = vpop.f32.mrb[0].mxu0
    %420 = vdwg.mxu0
    %vm421 = vcmp.gt.f32.partialorder %v418, 0.0
    %v422 = vmul.f32 %v418, 0.01
    %v423 = vsel %vm421, %v418, %v422
    %v424 = vld [vmem:[#allocation5] sm:$0xff]
    %v425 = vld [vmem:[#allocation5 + $0x8] sm:$0xff]
    %v426 = vld [vmem:[#allocation5 + $0x10] sm:$0xff]
    %v427 = vld [vmem:[#allocation5 + $0x18] sm:$0xff]
    %v428 = vld [vmem:[#allocation5 + $0x20] sm:$0xff]
    %v429 = vld [vmem:[#allocation5 + $0x28] sm:$0xff]
    %v430 = vld [vmem:[#allocation5 + $0x30] sm:$0xff]
    %v431 = vld [vmem:[#allocation5 + $0x38] sm:$0xff]
    %v432 = vld [vmem:[#allocation5 + $0x40] sm:$0xff]
    %v433 = vld [vmem:[#allocation5 + $0x48] sm:$0xff]
    %v434 = vld [vmem:[#allocation5 + $0x50] sm:$0xff]
    %v435 = vld [vmem:[#allocation5 + $0x58] sm:$0xff]
    %v436 = vld [vmem:[#allocation5 + $0x60] sm:$0xff]
    %v437 = vld [vmem:[#allocation5 + $0x68] sm:$0xff]
    %v438 = vld [vmem:[#allocation5 + $0x70] sm:$0xff]
    %v439 = vld [vmem:[#allocation5 + $0x78] sm:$0xff]
    %v440 = vld [vmem:[%s8] sm:$0x1]
    %v442 = vlaneseq
    %v443 = vshrl.u32 %v442, 7
    %v444 = vsub.s32 0, %v443
    %v445 = vrot.slane %v440, %v444
    %447 = vmatprep.subr.mxu0 0.0
    %448 = vmatpush1.msra.mxu0 %v424
    %449 = vmatprep.subr.mxu0 0.0
    %450 = vmatpush1.msra.mxu0 %v425
    %451 = vmatprep.subr.mxu0 0.0
    %452 = vmatpush1.msra.mxu0 %v426
    %453 = vmatprep.subr.mxu0 0.0
    %454 = vmatpush1.msra.mxu0 %v427
    %455 = vmatprep.subr.mxu0 0.0
    %456 = vmatpush1.msra.mxu0 %v428
    %457 = vmatprep.subr.mxu0 0.0
    %458 = vmatpush1.msra.mxu0 %v429
    %459 = vmatprep.subr.mxu0 0.0
    %460 = vmatpush1.msra.mxu0 %v430
    %461 = vmatprep.subr.mxu0 0.0
    %462 = vmatpush1.msra.mxu0 %v431
    %463 = vmatprep.subr.mxu0 0.0
    %464 = vmatpush1.msra.mxu0 %v432
    %465 = vmatprep.subr.mxu0 0.0
    %466 = vmatpush1.msra.mxu0 %v433
    %467 = vmatprep.subr.mxu0 0.0
    %468 = vmatpush1.msra.mxu0 %v434
    %469 = vmatprep.subr.mxu0 0.0
    %470 = vmatpush1.msra.mxu0 %v435
    %471 = vmatprep.subr.mxu0 0.0
    %472 = vmatpush1.msra.mxu0 %v436
    %473 = vmatprep.subr.mxu0 0.0
    %474 = vmatpush1.msra.mxu0 %v437
    %475 = vmatprep.subr.mxu0 0.0
    %476 = vmatpush1.msra.mxu0 %v438
    %477 = vmatprep.subr.mxu0 0.0
    %478 = vmatpush1.msra.mxu0 %v439
    %479 = vmatprep.subr.mxu0 0.0
    %480 = vmatpush1.msra.mxu0 0.0
    %481 = vmatprep.subr.mxu0 0.0
    %482 = vmatpush1.msra.mxu0 0.0
    %483 = vmatprep.subr.mxu0 0.0
    %484 = vmatpush1.msra.mxu0 0.0
    %485 = vmatprep.subr.mxu0 0.0
    %486 = vmatpush1.msra.mxu0 0.0
    %487 = vmatprep.subr.mxu0 0.0
    %488 = vmatpush1.msra.mxu0 0.0
    %489 = vmatprep.subr.mxu0 0.0
    %490 = vmatpush1.msra.mxu0 0.0
    %491 = vmatprep.subr.mxu0 0.0
    %492 = vmatpush1.msra.mxu0 0.0
    %493 = vmatprep.subr.mxu0 0.0
    %494 = vmatpush1.msra.mxu0 0.0
    %495 = vmatprep.subr.mxu0 0.0
    %496 = vmatpush1.msra.mxu0 0.0
    %497 = vmatprep.subr.mxu0 0.0
    %498 = vmatpush1.msra.mxu0 0.0
    %499 = vmatprep.subr.mxu0 0.0
    %500 = vmatpush1.msra.mxu0 0.0
    %501 = vmatprep.subr.mxu0 0.0
    %502 = vmatpush1.msra.mxu0 0.0
    %503 = vmatprep.subr.mxu0 0.0
    %504 = vmatpush1.msra.mxu0 0.0
    %505 = vmatprep.subr.mxu0 0.0
    %506 = vmatpush1.msra.mxu0 0.0
    %507 = vmatprep.subr.mxu0 0.0
    %508 = vmatpush1.msra.mxu0 0.0
    %509 = vmatprep.subr.mxu0 0.0
    %510 = vmatpush1.msra.mxu0 0.0
    %511 = vmatprep.mubr.f32.mxu0 0.0
    %512 = vmatmul.mubr.f32.gmra.mrb[0].mxu0 %v423
    %v513 = vpop.f32.mrb[0].mxu0
    %v514 = vadd.f32 %v445, %v513
    %v515 = vpop.f32.mrb[0].mxu0
    %516 = vdwg.mxu0
    %517 = vst [vmem:[#allocation7] sm:$0xff] %v514
    // Predicated region
    $region46: #{tpu_custom_call.1} parent=1 // pred_check
      _
    $region47: #{tpu_custom_call.1} parent=1 // pred_check_branch
      %519 = sbr.rel (0) target = $region49
    $region48: #{tpu_custom_call.1} parent=1 // pred_region
      %s521 = ssub.s32 128, 128
      %522 = vsyncadd [#allocation4], %s521
      %s524 = sshll.u32 [#allocation7], 4
      %s525 = int_to_ptr.vmem [resolvable:$true] %s524
      %527 = dma.vmem_to_hbm [thread:$0]  %s525, 128, %s9, [#allocation4]
    $region49: #{tpu_custom_call.1} parent=1 // pred_fallthru
      _
    // Predicated region
    $region50: #{tpu_custom_call.1} parent=1 // pred_check
      _
    $region51: #{tpu_custom_call.1} parent=1 // pred_check_branch
      %529 = sbr.rel (0) target = $region53
    $region52: #{tpu_custom_call.1} parent=1 // pred_region
      %530 = dma.done [#allocation4], 128
    $region53: #{tpu_custom_call.1} parent=1 // pred_fallthru
      _
    %531 = vsyncpa [#allocation3], 1
    %532 = vsyncpa [#allocation6], 1
    %533 = vsyncpa [#allocation4], 1

</llo_original>
